<compile_context>
chip_gen: v7x
topology: tpu7x:2x2x1
jax: 0.10.0
libtpu: 0.0.40
codegen_flags: <defaults>
</compile_context>

<pallas_src>
import functools

import jax
import jax.numpy as jnp
from jax.experimental import pallas as pl
from jax.experimental.pallas import tpu as pltpu


def dueling_q_kernel(x_ref, w0_ref, w_ref, b_ref, rows_ref, *, value_col):
    """One batch tile: rows_ref[:, j<A] = value + adv_j ; rows_ref[:, j>=A] = value."""
    H = w_ref.shape[1]          # fused / padded hidden width (128)
    cdt = w_ref.dtype           # MXU operand dtype (f32 or bf16); accumulate in f32
    b = b_ref[...]              # (4, H) f32 biases

    # L0: feature layer.  h = [ReLU(x @ Wf + bf) | 0]
    h = jnp.dot(x_ref[...].astype(cdt), w0_ref[...],
                preferred_element_type=jnp.float32) + b[0:1, :]
    h = jnp.maximum(h, 0.0)

    # L1: fused advantage-1 / value-1 -> one lane-dense 128-wide matmul.
    h = jnp.dot(h.astype(cdt), w_ref[0:H, :],
                preferred_element_type=jnp.float32) + b[1:2, :]
    h = jnp.maximum(h, 0.0)

    # L2: fused advantage-2 / value-output.
    #     cols [0:A2) = a2 (pre-ReLU), col value_col = value (no ReLU), rest 0.
    h = jnp.dot(h.astype(cdt), w_ref[H:2 * H, :],
                preferred_element_type=jnp.float32) + b[2:3, :]
    # ReLU the advantage columns only; the value column passes through raw.
    lane = jax.lax.broadcasted_iota(jnp.int32, h.shape, 1)
    h = jnp.where(lane == value_col, h, jnp.maximum(h, 0.0))

    # L3: advantage head with the value folded in via the all-ones row of W3:
    #     rows[:, j<A]  = adv_j + value
    #     rows[:, j>=A] = value            (zero weight cols + zero bias)
    rows = jnp.dot(h.astype(cdt), w_ref[2 * H:3 * H, :],
                   preferred_element_type=jnp.float32) + b[3:4, :]
    rows_ref[...] = rows.astype(rows_ref.dtype)   # full 128-lane unmasked store


def pack_params(p, action_size, fused_width=128, dtype=jnp.float32):
    """Zero-pad & fuse the 12 Linear params into 3 arrays (w0, w_blob, b_blob)."""
    H = fused_width
    S, F = p["wf"].shape                       # state_size, feature_units
    A1 = p["wa1"].shape[1]                     # advantage hidden 1
    A2 = p["wa2"].shape[1]                     # advantage hidden 2
    V1 = p["wv1"].shape[1]                     # value hidden 1
    assert F <= H and A1 + V1 <= H and A2 + 1 <= H and action_size < H

    cw = lambda a: a.astype(dtype)             # weights: compute dtype
    cb = lambda a: a.astype(jnp.float32)       # biases: keep f32

    w0 = jnp.zeros((S, H), dtype).at[:, :F].set(cw(p["wf"]))
    b0 = jnp.zeros((H,), jnp.float32).at[:F].set(cb(p["bf"][0]))

    w1 = (jnp.zeros((H, H), dtype)
          .at[:F, :A1].set(cw(p["wa1"]))
          .at[:F, A1:A1 + V1].set(cw(p["wv1"])))
    b1 = (jnp.zeros((H,), jnp.float32)
          .at[:A1].set(cb(p["ba1"][0]))
          .at[A1:A1 + V1].set(cb(p["bv1"][0])))

    w2 = (jnp.zeros((H, H), dtype)
          .at[:A1, :A2].set(cw(p["wa2"]))
          .at[A1:A1 + V1, A2:A2 + 1].set(cw(p["wv2"])))
    b2 = (jnp.zeros((H,), jnp.float32)
          .at[:A2].set(cb(p["ba2"][0]))
          .at[A2].set(cb(p["bv2"][0, 0])))

    # Row A2 (= value_col) of w3 is all ones: the MXU broadcasts the value into
    # every output lane for free, so the kernel never extracts a single lane.
    w3 = (jnp.zeros((H, H), dtype)
          .at[:A2, :action_size].set(cw(p["wa3"]))
          .at[A2, :].set(jnp.ones((H,), dtype)))
    b3 = jnp.zeros((H,), jnp.float32).at[:action_size].set(cb(p["ba3"][0]))

    return {
        "w0": w0,                                      # (S, 128)
        "w": jnp.concatenate([w1, w2, w3], axis=0),    # (384, 128)
        "b": jnp.stack([b0, b1, b2, b3], axis=0),      # (4, 128) f32
        "value_col": A2,
        "action_size": action_size,
    }


def dueling_q_forward(x, packed, *, tile_b=1024):
    """Batch-tiled fused forward pass + tiny XLA epilogue for the global mean."""
    assert tile_b % 8 == 0
    B, S = x.shape
    A = packed["action_size"]
    H = packed["w"].shape[1]

    # Pad batch to a tile multiple: the compiled kernel depends only on the
    # padded size / grid, so varying RL batch sizes reuse the same compile.
    num_blocks = max(1, -(-B // tile_b))
    B_pad = num_blocks * tile_b
    if B_pad != B:
        x = jnp.pad(x, ((0, B_pad - B), (0, 0)))

    kernel = functools.partial(dueling_q_kernel, value_col=packed["value_col"])
    w0, w, b = packed["w0"], packed["w"], packed["b"]

    # Scoped-VMEM request sized from the actual buffers (double-buffered x/out
    # blocks + weights + headroom for the ~(tile_b,128) f32 live temporaries).
    blk_bytes = tile_b * S * x.dtype.itemsize + tile_b * H * 4
    w_bytes = int(w0.size * w0.dtype.itemsize + w.size * w.dtype.itemsize
                  + b.size * b.dtype.itemsize)
    vmem_limit = int(2 * blk_bytes + w_bytes + 8 * tile_b * H * 4 + (2 << 20))
    vmem_limit = max(vmem_limit, 8 << 20)

    rows = pl.pallas_call(
        kernel,
        out_shape=jax.ShapeDtypeStruct((B_pad, H), jnp.float32),
        grid=(num_blocks,),
        in_specs=[
            pl.BlockSpec((tile_b, S), lambda i: (i, 0)),   # x tile (pipelined)
            pl.BlockSpec((S, H), lambda i: (0, 0)),        # weights: resident
            pl.BlockSpec((3 * H, H), lambda i: (0, 0)),
            pl.BlockSpec((4, H), lambda i: (0, 0)),
        ],
        out_specs=pl.BlockSpec((tile_b, H), lambda i: (i, 0)),  # lane-dense rows
        compiler_params=pltpu.CompilerParams(
            dimension_semantics=("parallel",),             # megacore batch split
            vmem_limit_bytes=vmem_limit,
        ),
    )(x, w0, w, b)

    # Epilogue (tiny, plain XLA): global advantage mean over batch AND actions,
    # exactly matching PyTorch's `advantage.mean()`. Padding rows are sliced
    # off first so they never touch the mean.
    r = rows[:B]                         # (B, 128)
    adv_plus_v = r[:, :A]                # value + adv
    v = r[:, H - 1:H]                    # any padding column holds pure value
    adv_mean = (jnp.sum(adv_plus_v) - A * jnp.sum(v)) / (B * A)
    return adv_plus_v - adv_mean


def init_params(key, state_size, action_size,
                feature_units=64, adv_units_1=64, adv_units_2=32, value_units=64):
    """PyTorch-Linear-style init: U[-1/sqrt(fan_in), 1/sqrt(fan_in)]; W stored (in, out)."""
    def linear(k, fan_in, fan_out):
        kw, kb = jax.random.split(k)
        bound = 1.0 / jnp.sqrt(fan_in)
        w = jax.random.uniform(kw, (fan_in, fan_out), jnp.float32, -bound, bound)
        b = jax.random.uniform(kb, (1, fan_out), jnp.float32, -bound, bound)
        return w, b

    keys = jax.random.split(key, 6)
    wf, bf = linear(keys[0], state_size, feature_units)
    wa1, ba1 = linear(keys[1], feature_units, adv_units_1)
    wa2, ba2 = linear(keys[2], adv_units_1, adv_units_2)
    wa3, ba3 = linear(keys[3], adv_units_2, action_size)
    wv1, bv1 = linear(keys[4], feature_units, value_units)
    wv2, bv2 = linear(keys[5], value_units, 1)
    return {"wf": wf, "bf": bf, "wa1": wa1, "ba1": ba1, "wa2": wa2, "ba2": ba2,
            "wa3": wa3, "ba3": ba3, "wv1": wv1, "bv1": bv1, "wv2": wv2, "bv2": bv2}


def reference_forward(x, p):
    """Plain-JAX reference with the original (unfused) params."""
    feat = jnp.maximum(x @ p["wf"] + p["bf"], 0.0)
    a = jnp.maximum(feat @ p["wa1"] + p["ba1"], 0.0)
    a = jnp.maximum(a @ p["wa2"] + p["ba2"], 0.0)
    adv = a @ p["wa3"] + p["ba3"]
    v = jnp.maximum(feat @ p["wv1"] + p["bv1"], 0.0)
    val = v @ p["wv2"] + p["bv2"]
    return val + adv - jnp.mean(adv)


if __name__ == "__main__":
    batch = 2
    state_size = 16
    action_size = 4

    key = jax.random.PRNGKey(0)
    k_params, k_x, k_xb = jax.random.split(key, 3)
    params = init_params(k_params, state_size, action_size)
    packed_f32 = pack_params(params, action_size, dtype=jnp.float32)

    # Small-shape correctness run (single grid block, batch padded to tile).
    x = jax.random.normal(k_x, (batch, state_size), jnp.float32)
    out = jax.block_until_ready(dueling_q_forward(x, packed_f32, tile_b=128))
    ref = reference_forward(x, params)
    assert out.shape == (batch, action_size)
    assert jnp.allclose(out, ref, atol=1e-3, rtol=1e-3), (out, ref)

    # Multi-block pipelined path: batch not a tile multiple -> padded, grid=(3,).
    xb = jax.random.normal(k_xb, (300, state_size), jnp.float32)
    outb = jax.block_until_ready(dueling_q_forward(xb, packed_f32, tile_b=128))
    refb = reference_forward(xb, params)
    assert jnp.allclose(outb, refb, atol=1e-3, rtol=1e-3)

    # bf16 weights/activations with f32 accumulation (MXU-native path).
    packed_bf16 = pack_params(params, action_size, dtype=jnp.bfloat16)
    outc = jax.block_until_ready(dueling_q_forward(xb, packed_bf16, tile_b=256))
    assert outc.shape == (300, action_size)
    assert jnp.allclose(outc, refb, atol=5e-2, rtol=5e-2)

    print("KERNEL_OK")
</pallas_src>

<mosaic_0001>
module attributes {stable_mosaic.version = 11 : i64} {
  func.func @dueling_q_kernel(%arg0: i32, %arg1: memref<128x16xf32, #tpu.memory_space<vmem>>, %arg2: memref<16x128xf32, #tpu.memory_space<vmem>>, %arg3: memref<384x128xf32, #tpu.memory_space<vmem>>, %arg4: memref<4x128xf32, #tpu.memory_space<vmem>>, %arg5: memref<128x128xf32, #tpu.memory_space<vmem>>) attributes {dimension_semantics = [#tpu.dimension_semantics<parallel>], iteration_bounds = array<i64: 1>, scalar_prefetch = 0 : i64, scratch_operands = 0 : i64, tpu.core_type = #tpu.core_type<tc>, window_params = [{transform_indices = @transform_0, window_bounds = array<i64: 128, 16>}, {pipeline_mode = #tpu.pipeline_mode<synchronous>, transform_indices = @transform_1, window_bounds = array<i64: 16, 128>}, {pipeline_mode = #tpu.pipeline_mode<synchronous>, transform_indices = @transform_2, window_bounds = array<i64: 384, 128>}, {pipeline_mode = #tpu.pipeline_mode<synchronous>, transform_indices = @transform_3, window_bounds = array<i64: 4, 128>}, {transform_indices = @transform_4, window_bounds = array<i64: 128, 128>}]} {
    %c0 = arith.constant 0 : index
    %c0_0 = arith.constant 0 : index
    %0 = vector.load %arg4[%c0, %c0_0] : memref<4x128xf32, #tpu.memory_space<vmem>>, vector<4x128xf32>
    %c0_1 = arith.constant 0 : index
    %c0_2 = arith.constant 0 : index
    %1 = vector.load %arg1[%c0_1, %c0_2] : memref<128x16xf32, #tpu.memory_space<vmem>>, vector<128x16xf32>
    %c0_3 = arith.constant 0 : index
    %c0_4 = arith.constant 0 : index
    %2 = vector.load %arg2[%c0_3, %c0_4] : memref<16x128xf32, #tpu.memory_space<vmem>>, vector<16x128xf32>
    %cst = arith.constant dense<0.000000e+00> : vector<128x128xf32>
    %3 = tpu.matmul %1, %2, %cst {dimension_numbers = #tpu.dot_dimension_numbers<[1], [0], [0], [1], [0, 0, 1, 1], [], []>} : vector<128x16xf32>, vector<16x128xf32>, vector<128x128xf32> -> vector<128x128xf32>
    %4 = vector.extract_strided_slice %0 {offsets = [0, 0], sizes = [1, 128], strides = [1, 1]} : vector<4x128xf32> to vector<1x128xf32>
    %5 = vector.broadcast %4 : vector<1x128xf32> to vector<128x128xf32>
    %6 = arith.addf %3, %5 : vector<128x128xf32>
    %cst_5 = arith.constant 0.000000e+00 : f32
    %7 = vector.broadcast %cst_5 : f32 to vector<128x128xf32>
    %8 = arith.maximumf %6, %7 : vector<128x128xf32>
    %c0_6 = arith.constant 0 : index
    %c0_7 = arith.constant 0 : index
    %9 = vector.load %arg3[%c0_6, %c0_7] : memref<384x128xf32, #tpu.memory_space<vmem>>, vector<128x128xf32>
    %cst_8 = arith.constant dense<0.000000e+00> : vector<128x128xf32>
    %10 = tpu.matmul %8, %9, %cst_8 {dimension_numbers = #tpu.dot_dimension_numbers<[1], [0], [0], [1], [0, 0, 1, 1], [], []>} : vector<128x128xf32>, vector<128x128xf32>, vector<128x128xf32> -> vector<128x128xf32>
    %11 = vector.extract_strided_slice %0 {offsets = [1, 0], sizes = [1, 128], strides = [1, 1]} : vector<4x128xf32> to vector<1x128xf32>
    %12 = vector.broadcast %11 : vector<1x128xf32> to vector<128x128xf32>
    %13 = arith.addf %10, %12 : vector<128x128xf32>
    %cst_9 = arith.constant 0.000000e+00 : f32
    %14 = vector.broadcast %cst_9 : f32 to vector<128x128xf32>
    %15 = arith.maximumf %13, %14 : vector<128x128xf32>
    %c128 = arith.constant 128 : index
    %c0_10 = arith.constant 0 : index
    %16 = vector.load %arg3[%c128, %c0_10] : memref<384x128xf32, #tpu.memory_space<vmem>>, vector<128x128xf32>
    %cst_11 = arith.constant dense<0.000000e+00> : vector<128x128xf32>
    %17 = tpu.matmul %15, %16, %cst_11 {dimension_numbers = #tpu.dot_dimension_numbers<[1], [0], [0], [1], [0, 0, 1, 1], [], []>} : vector<128x128xf32>, vector<128x128xf32>, vector<128x128xf32> -> vector<128x128xf32>
    %18 = vector.extract_strided_slice %0 {offsets = [2, 0], sizes = [1, 128], strides = [1, 1]} : vector<4x128xf32> to vector<1x128xf32>
    %19 = vector.broadcast %18 : vector<1x128xf32> to vector<128x128xf32>
    %20 = arith.addf %17, %19 : vector<128x128xf32>
    %21 = tpu.iota {dimensions = array<i32: 1>} : vector<128x128xi32>
    %c32_i32 = arith.constant 32 : i32
    %22 = vector.broadcast %c32_i32 : i32 to vector<128x128xi32>
    %23 = arith.cmpi eq, %21, %22 : vector<128x128xi32>
    %cst_12 = arith.constant 0.000000e+00 : f32
    %24 = vector.broadcast %cst_12 : f32 to vector<128x128xf32>
    %25 = arith.maximumf %20, %24 : vector<128x128xf32>
    %26 = arith.select %23, %20, %25 : vector<128x128xi1>, vector<128x128xf32>
    %c256 = arith.constant 256 : index
    %c0_13 = arith.constant 0 : index
    %27 = vector.load %arg3[%c256, %c0_13] : memref<384x128xf32, #tpu.memory_space<vmem>>, vector<128x128xf32>
    %cst_14 = arith.constant dense<0.000000e+00> : vector<128x128xf32>
    %28 = tpu.matmul %26, %27, %cst_14 {dimension_numbers = #tpu.dot_dimension_numbers<[1], [0], [0], [1], [0, 0, 1, 1], [], []>} : vector<128x128xf32>, vector<128x128xf32>, vector<128x128xf32> -> vector<128x128xf32>
    %29 = vector.extract_strided_slice %0 {offsets = [3, 0], sizes = [1, 128], strides = [1, 1]} : vector<4x128xf32> to vector<1x128xf32>
    %30 = vector.broadcast %29 : vector<1x128xf32> to vector<128x128xf32>
    %31 = arith.addf %28, %30 : vector<128x128xf32>
    %c0_15 = arith.constant 0 : index
    %c0_16 = arith.constant 0 : index
    %32 = vector.load %arg5[%c0_15, %c0_16] : memref<128x128xf32, #tpu.memory_space<vmem>>, vector<128x128xf32>
    tpu.vector_store %arg5[%c0_15, %c0_16], %31 {strides = array<i32>} : memref<128x128xf32, #tpu.memory_space<vmem>>, vector<128x128xf32>,
    return
  }
  func.func @transform_0(%arg0: i32) -> (i32, i32) {
    %c0_i32 = arith.constant 0 : i32
    %c0_i32_0 = arith.constant 0 : i32
    return %arg0, %c0_i32 : i32, i32
  }
  func.func @transform_1(%arg0: i32) -> (i32, i32) {
    %c0_i32 = arith.constant 0 : i32
    %c0_i32_0 = arith.constant 0 : i32
    %c0_i32_1 = arith.constant 0 : i32
    return %c0_i32, %c0_i32_0 : i32, i32
  }
  func.func @transform_2(%arg0: i32) -> (i32, i32) {
    %c0_i32 = arith.constant 0 : i32
    %c0_i32_0 = arith.constant 0 : i32
    %c0_i32_1 = arith.constant 0 : i32
    return %c0_i32, %c0_i32_0 : i32, i32
  }
  func.func @transform_3(%arg0: i32) -> (i32, i32) {
    %c0_i32 = arith.constant 0 : i32
    %c0_i32_0 = arith.constant 0 : i32
    %c0_i32_1 = arith.constant 0 : i32
    return %c0_i32, %c0_i32_0 : i32, i32
  }
  func.func @transform_4(%arg0: i32) -> (i32, i32) {
    %c0_i32 = arith.constant 0 : i32
    %c0_i32_0 = arith.constant 0 : i32
    return %arg0, %c0_i32 : i32, i32
  }
}

</mosaic_0001>

<llo_original>
// kernel: tpu_custom_call.1
$region0: #{tpu_custom_call.1}
  #allocation0 [shape = 'u32[]', space=smem, size = 0x4, offset = 0x4, fixed_abs, tag = 'smem constant byte address 0x4 - core index']
  #allocation1 [shape = 'u32[144,128]{1,0:T(1,128)}', space=vmem, size = 0x12000, scoped, tag = 'internal scratch']
  %s0 = inlined_call_operand.vmem [shape: f32[128,16], index: 0, kind: input, shape index: {}]
  %s1 = inlined_call_operand.vmem [shape: f32[16,128], index: 1, kind: input, shape index: {}]
  %s2 = inlined_call_operand.hbm [shape: f32[384,128], index: 2, kind: input, shape index: {}]
  %s3 = inlined_call_operand.vmem [shape: f32[4,128], index: 3, kind: input, shape index: {}]
  %s4 = inlined_call_operand.hbm [shape: f32[128,128], index: 4, kind: output, shape index: {}]
  %s5 = sld [smem:[#allocation0]]
  $region30: #{tpu_custom_call.1} parent=0
    _
  %s7 = ssub.s32 1, %s5
  %s8 = scalar_select 0, %s7, %s5
  $region1: #{tpu_custom_call.1} parent=0
    #allocation2 [shape = 'u8[196608]{0}', space=vmem, size = 0x30000, scoped, tag = 'input window, operand 2, single buffered']
    #allocation3 [shape = 's32[1]{0}', space=sflag, size = 0x4, scoped, tag = 'scoped memory for tpu_custom_call.1']
    #allocation4 [shape = 's32[1]{0}', space=sflag, size = 0x4, scoped, tag = 'scoped memory for tpu_custom_call.1']
    #allocation5 [shape = 'u8[65536]{0}', space=vmem, size = 0x10000, scoped, tag = 'output window, operand 0, single buffered']
    %9 = vsyncpa [#allocation3], 0
    %10 = vsyncpa [#allocation4], 0
    // Predicated region
    $region2: #{tpu_custom_call.1} parent=1 // pred_check
      _
    $region3: #{tpu_custom_call.1} parent=1 // pred_check_branch
      %12 = sbr.rel (0) target = $region5
    $region4: #{tpu_custom_call.1} parent=1 // pred_region
      _
    $region5: #{tpu_custom_call.1} parent=1 // pred_fallthru
      _
    // Predicated region
    $region6: #{tpu_custom_call.1} parent=1 // pred_check
      _
    $region7: #{tpu_custom_call.1} parent=1 // pred_check_branch
      %14 = sbr.rel (0) target = $region9
    $region8: #{tpu_custom_call.1} parent=1 // pred_region
      _
    $region9: #{tpu_custom_call.1} parent=1 // pred_fallthru
      _
    // Predicated region
    $region10: #{tpu_custom_call.1} parent=1 // pred_check
      _
    $region11: #{tpu_custom_call.1} parent=1 // pred_check_branch
      %16 = sbr.rel (0) target = $region13
    $region12: #{tpu_custom_call.1} parent=1 // pred_region
      %s18 = ssub.s32 6144, 6144
      %19 = vsyncadd [#allocation3], %s18
      %s20 = sshll.u32 [#allocation2], 4
      %s21 = int_to_ptr.vmem [resolvable:$true] %s20
      %26 = dma.hbm_to_vmem [thread:$0]  %s2, 6144, %s21, [#allocation3], 128, 128, 8
    $region13: #{tpu_custom_call.1} parent=1 // pred_fallthru
      _
    // Predicated region
    $region14: #{tpu_custom_call.1} parent=1 // pred_check
      _
    $region15: #{tpu_custom_call.1} parent=1 // pred_check_branch
      %28 = sbr.rel (0) target = $region17
    $region16: #{tpu_custom_call.1} parent=1 // pred_region
      _
    $region17: #{tpu_custom_call.1} parent=1 // pred_fallthru
      _
    // Predicated region
    $region18: #{tpu_custom_call.1} parent=1 // pred_check
      _
    $region19: #{tpu_custom_call.1} parent=1 // pred_check_branch
      %30 = sbr.rel (0) target = $region21
    $region20: #{tpu_custom_call.1} parent=1 // pred_region
      %31 = dma.done [#allocation3], 6144
    $region21: #{tpu_custom_call.1} parent=1 // pred_fallthru
      _
    %v32 = vld [vmem:[%s3] sm:$0xf]
    %v33 = vld [vmem:[%s0] sm:$0xff]
    %v34 = vld [vmem:[%s0 + $0x8] sm:$0xff]
    %v35 = vld [vmem:[%s0 + $0x10] sm:$0xff]
    %v36 = vld [vmem:[%s0 + $0x18] sm:$0xff]
    %v37 = vld [vmem:[%s0 + $0x20] sm:$0xff]
    %v38 = vld [vmem:[%s0 + $0x28] sm:$0xff]
    %v39 = vld [vmem:[%s0 + $0x30] sm:$0xff]
    %v40 = vld [vmem:[%s0 + $0x38] sm:$0xff]
    %v41 = vld [vmem:[%s0 + $0x40] sm:$0xff]
    %v42 = vld [vmem:[%s0 + $0x48] sm:$0xff]
    %v43 = vld [vmem:[%s0 + $0x50] sm:$0xff]
    %v44 = vld [vmem:[%s0 + $0x58] sm:$0xff]
    %v45 = vld [vmem:[%s0 + $0x60] sm:$0xff]
    %v46 = vld [vmem:[%s0 + $0x68] sm:$0xff]
    %v47 = vld [vmem:[%s0 + $0x70] sm:$0xff]
    %v48 = vld [vmem:[%s0 + $0x78] sm:$0xff]
    %v49 = vld [vmem:[%s1] sm:$0xff]
    %v50 = vld [vmem:[%s1 + $0x8] sm:$0xff]
    %v51 = vlaneseq
    %v52 = vshrl.u32 %v51, 7
    %v53 = vsub.s32 0, %v52
    %v54 = vrot.slane %v32, %v53
    %vm55 = vcmask 130048
    %v57 = vsel %vm55, %v33, 0
    %v60 = vsel %vm55, %v34, 0
    %v63 = vsel %vm55, %v35, 0
    %v66 = vsel %vm55, %v36, 0
    %v69 = vsel %vm55, %v37, 0
    %v72 = vsel %vm55, %v38, 0
    %v75 = vsel %vm55, %v39, 0
    %v78 = vsel %vm55, %v40, 0
    %v81 = vsel %vm55, %v41, 0
    %v84 = vsel %vm55, %v42, 0
    %v87 = vsel %vm55, %v43, 0
    %v90 = vsel %vm55, %v44, 0
    %v93 = vsel %vm55, %v45, 0
    %v96 = vsel %vm55, %v46, 0
    %v99 = vsel %vm55, %v47, 0
    %v102 = vsel %vm55, %v48, 0
    %104 = vmatprep.subr.mxu0 0.0
    %105 = vmatpush1.msra.mxu0 %v49
    %106 = vmatprep.subr.mxu0 0.0
    %107 = vmatpush1.msra.mxu0 %v50
    %108 = vmatprep.subr.mxu0 0.0
    %109 = vmatpush1.msra.mxu0 0.0
    %110 = vmatprep.subr.mxu0 0.0
    %111 = vmatpush1.msra.mxu0 0.0
    %112 = vmatprep.subr.mxu0 0.0
    %113 = vmatpush1.msra.mxu0 0.0
    %114 = vmatprep.subr.mxu0 0.0
    %115 = vmatpush1.msra.mxu0 0.0
    %116 = vmatprep.subr.mxu0 0.0
    %117 = vmatpush1.msra.mxu0 0.0
    %118 = vmatprep.subr.mxu0 0.0
    %119 = vmatpush1.msra.mxu0 0.0
    %120 = vmatprep.subr.mxu0 0.0
    %121 = vmatpush1.msra.mxu0 0.0
    %122 = vmatprep.subr.mxu0 0.0
    %123 = vmatpush1.msra.mxu0 0.0
    %124 = vmatprep.subr.mxu0 0.0
    %125 = vmatpush1.msra.mxu0 0.0
    %126 = vmatprep.subr.mxu0 0.0
    %127 = vmatpush1.msra.mxu0 0.0
    %128 = vmatprep.subr.mxu0 0.0
    %129 = vmatpush1.msra.mxu0 0.0
    %130 = vmatprep.subr.mxu0 0.0
    %131 = vmatpush1.msra.mxu0 0.0
    %132 = vmatprep.subr.mxu0 0.0
    %133 = vmatpush1.msra.mxu0 0.0
    %134 = vmatprep.subr.mxu0 0.0
    %135 = vmatpush1.msra.mxu0 0.0
    %136 = vmatprep.subr.mxu0 0.0
    %137 = vmatpush1.msra.mxu0 0.0
    %138 = vmatprep.subr.mxu0 0.0
    %139 = vmatpush1.msra.mxu0 0.0
    %140 = vmatprep.subr.mxu0 0.0
    %141 = vmatpush1.msra.mxu0 0.0
    %142 = vmatprep.subr.mxu0 0.0
    %143 = vmatpush1.msra.mxu0 0.0
    %144 = vmatprep.subr.mxu0 0.0
    %145 = vmatpush1.msra.mxu0 0.0
    %146 = vmatprep.subr.mxu0 0.0
    %147 = vmatpush1.msra.mxu0 0.0
    %148 = vmatprep.subr.mxu0 0.0
    %149 = vmatpush1.msra.mxu0 0.0
    %150 = vmatprep.subr.mxu0 0.0
    %151 = vmatpush1.msra.mxu0 0.0
    %152 = vmatprep.subr.mxu0 0.0
    %153 = vmatpush1.msra.mxu0 0.0
    %154 = vmatprep.subr.mxu0 0.0
    %155 = vmatpush1.msra.mxu0 0.0
    %156 = vmatprep.subr.mxu0 0.0
    %157 = vmatpush1.msra.mxu0 0.0
    %158 = vmatprep.subr.mxu0 0.0
    %159 = vmatpush1.msra.mxu0 0.0
    %160 = vmatprep.subr.mxu0 0.0
    %161 = vmatpush1.msra.mxu0 0.0
    %162 = vmatprep.subr.mxu0 0.0
    %163 = vmatpush1.msra.mxu0 0.0
    %164 = vmatprep.subr.mxu0 0.0
    %165 = vmatpush1.msra.mxu0 0.0
    %166 = vmatprep.subr.mxu0 0.0
    %167 = vmatpush1.msra.mxu0 0.0
    %168 = vmatprep.mubr.f32.mxu0 0.0
    %169 = vmatmul.mubr.f32.gmra.mrb[0].mxu0 %v57
    %v170 = vpop.f32.mrb[0].mxu0
    %v171 = vadd.f32 %v54, %v170
    %v172 = vpop.f32.mrb[0].mxu0
    %173 = vmatprep.mubr.f32.mxu0 0.0
    %174 = vmatmul.mubr.f32.gmra.mrb[0].mxu0 %v60
    %v175 = vpop.f32.mrb[0].mxu0
    %v176 = vadd.f32 %v54, %v175
    %v177 = vpop.f32.mrb[0].mxu0
    %178 = vmatprep.mubr.f32.mxu0 0.0
    %179 = vmatmul.mubr.f32.gmra.mrb[0].mxu0 %v63
    %v180 = vpop.f32.mrb[0].mxu0
    %v181 = vadd.f32 %v54, %v180
    %v182 = vpop.f32.mrb[0].mxu0
    %183 = vmatprep.mubr.f32.mxu0 0.0
    %184 = vmatmul.mubr.f32.gmra.mrb[0].mxu0 %v66
    %v185 = vpop.f32.mrb[0].mxu0
    %v186 = vadd.f32 %v54, %v185
    %v187 = vpop.f32.mrb[0].mxu0
    %188 = vmatprep.mubr.f32.mxu0 0.0
    %189 = vmatmul.mubr.f32.gmra.mrb[0].mxu0 %v69
    %v190 = vpop.f32.mrb[0].mxu0
    %v191 = vadd.f32 %v54, %v190
    %v192 = vpop.f32.mrb[0].mxu0
    %193 = vmatprep.mubr.f32.mxu0 0.0
    %194 = vmatmul.mubr.f32.gmra.mrb[0].mxu0 %v72
    %v195 = vpop.f32.mrb[0].mxu0
    %v196 = vadd.f32 %v54, %v195
    %v197 = vpop.f32.mrb[0].mxu0
    %198 = vmatprep.mubr.f32.mxu0 0.0
    %199 = vmatmul.mubr.f32.gmra.mrb[0].mxu0 %v75
    %v200 = vpop.f32.mrb[0].mxu0
    %v201 = vadd.f32 %v54, %v200
    %v202 = vpop.f32.mrb[0].mxu0
    %203 = vmatprep.mubr.f32.mxu0 0.0
    %204 = vmatmul.mubr.f32.gmra.mrb[0].mxu0 %v78
    %v205 = vpop.f32.mrb[0].mxu0
    %v206 = vadd.f32 %v54, %v205
    %v207 = vpop.f32.mrb[0].mxu0
    %208 = vmatprep.mubr.f32.mxu0 0.0
    %209 = vmatmul.mubr.f32.gmra.mrb[0].mxu0 %v81
    %v210 = vpop.f32.mrb[0].mxu0
    %v211 = vadd.f32 %v54, %v210
    %v212 = vpop.f32.mrb[0].mxu0
    %213 = vmatprep.mubr.f32.mxu0 0.0
    %214 = vmatmul.mubr.f32.gmra.mrb[0].mxu0 %v84
    %v215 = vpop.f32.mrb[0].mxu0
    %v216 = vadd.f32 %v54, %v215
    %v217 = vpop.f32.mrb[0].mxu0
    %218 = vmatprep.mubr.f32.mxu0 0.0
    %219 = vmatmul.mubr.f32.gmra.mrb[0].mxu0 %v87
    %v220 = vpop.f32.mrb[0].mxu0
    %v221 = vadd.f32 %v54, %v220
    %v222 = vpop.f32.mrb[0].mxu0
    %223 = vmatprep.mubr.f32.mxu0 0.0
    %224 = vmatmul.mubr.f32.gmra.mrb[0].mxu0 %v90
    %v225 = vpop.f32.mrb[0].mxu0
    %v226 = vadd.f32 %v54, %v225
    %v227 = vpop.f32.mrb[0].mxu0
    %228 = vmatprep.mubr.f32.mxu0 0.0
    %229 = vmatmul.mubr.f32.gmra.mrb[0].mxu0 %v93
    %v230 = vpop.f32.mrb[0].mxu0
    %v231 = vadd.f32 %v54, %v230
    %v232 = vpop.f32.mrb[0].mxu0
    %233 = vmatprep.mubr.f32.mxu0 0.0
    %234 = vmatmul.mubr.f32.gmra.mrb[0].mxu0 %v96
    %v235 = vpop.f32.mrb[0].mxu0
    %v236 = vadd.f32 %v54, %v235
    %v237 = vpop.f32.mrb[0].mxu0
    %238 = vmatprep.mubr.f32.mxu0 0.0
    %239 = vmatmul.mubr.f32.gmra.mrb[0].mxu0 %v99
    %v240 = vpop.f32.mrb[0].mxu0
    %v241 = vadd.f32 %v54, %v240
    %v242 = vpop.f32.mrb[0].mxu0
    %243 = vmatprep.mubr.f32.mxu0 0.0
    %244 = vmatmul.mubr.f32.gmra.mrb[0].mxu0 %v102
    %v245 = vpop.f32.mrb[0].mxu0
    %v246 = vadd.f32 %v54, %v245
    %v247 = vpop.f32.mrb[0].mxu0
    %248 = vdwg.mxu0
    %v249 = vmax.f32 %v171, 0.0
    %v250 = vmax.f32 %v176, 0.0
    %v251 = vmax.f32 %v181, 0.0
    %v252 = vmax.f32 %v186, 0.0
    %v253 = vmax.f32 %v191, 0.0
    %v254 = vmax.f32 %v196, 0.0
    %v255 = vmax.f32 %v201, 0.0
    %v256 = vmax.f32 %v206, 0.0
    %v257 = vmax.f32 %v211, 0.0
    %v258 = vmax.f32 %v216, 0.0
    %v259 = vmax.f32 %v221, 0.0
    %v260 = vmax.f32 %v226, 0.0
    %v261 = vmax.f32 %v231, 0.0
    %v262 = vmax.f32 %v236, 0.0
    %v263 = vmax.f32 %v241, 0.0
    %v264 = vmax.f32 %v246, 0.0
    %v265 = vld [vmem:[#allocation2] sm:$0xff]
    %v266 = vld [vmem:[#allocation2 + $0x8] sm:$0xff]
    %v267 = vld [vmem:[#allocation2 + $0x10] sm:$0xff]
    %v268 = vld [vmem:[#allocation2 + $0x18] sm:$0xff]
    %v269 = vld [vmem:[#allocation2 + $0x20] sm:$0xff]
    %v270 = vld [vmem:[#allocation2 + $0x28] sm:$0xff]
    %v271 = vld [vmem:[#allocation2 + $0x30] sm:$0xff]
    %v272 = vld [vmem:[#allocation2 + $0x38] sm:$0xff]
    %v273 = vld [vmem:[#allocation2 + $0x40] sm:$0xff]
    %v274 = vld [vmem:[#allocation2 + $0x48] sm:$0xff]
    %v275 = vld [vmem:[#allocation2 + $0x50] sm:$0xff]
    %v276 = vld [vmem:[#allocation2 + $0x58] sm:$0xff]
    %v277 = vld [vmem:[#allocation2 + $0x60] sm:$0xff]
    %v278 = vld [vmem:[#allocation2 + $0x68] sm:$0xff]
    %v279 = vld [vmem:[#allocation2 + $0x70] sm:$0xff]
    %v280 = vld [vmem:[#allocation2 + $0x78] sm:$0xff]
    %v281 = vlaneseq
    %v282 = vshrl.u32 %v281, 7
    %v283 = vsub.s32 1, %v282
    %v284 = vrot.slane %v32, %v283
    %285 = vmatprep.subr.mxu0 0.0
    %286 = vmatpush1.msra.mxu0 %v265
    %287 = vmatprep.subr.mxu0 0.0
    %288 = vmatpush1.msra.mxu0 %v266
    %289 = vmatprep.subr.mxu0 0.0
    %290 = vmatpush1.msra.mxu0 %v267
    %291 = vmatprep.subr.mxu0 0.0
    %292 = vmatpush1.msra.mxu0 %v268
    %293 = vmatprep.subr.mxu0 0.0
    %294 = vmatpush1.msra.mxu0 %v269
    %295 = vmatprep.subr.mxu0 0.0
    %296 = vmatpush1.msra.mxu0 %v270
    %297 = vmatprep.subr.mxu0 0.0
    %298 = vmatpush1.msra.mxu0 %v271
    %299 = vmatprep.subr.mxu0 0.0
    %300 = vmatpush1.msra.mxu0 %v272
    %301 = vmatprep.subr.mxu0 0.0
    %302 = vmatpush1.msra.mxu0 %v273
    %303 = vmatprep.subr.mxu0 0.0
    %304 = vmatpush1.msra.mxu0 %v274
    %305 = vmatprep.subr.mxu0 0.0
    %306 = vmatpush1.msra.mxu0 %v275
    %307 = vmatprep.subr.mxu0 0.0
    %308 = vmatpush1.msra.mxu0 %v276
    %309 = vmatprep.subr.mxu0 0.0
    %310 = vmatpush1.msra.mxu0 %v277
    %311 = vmatprep.subr.mxu0 0.0
    %312 = vmatpush1.msra.mxu0 %v278
    %313 = vmatprep.subr.mxu0 0.0
    %314 = vmatpush1.msra.mxu0 %v279
    %315 = vmatprep.subr.mxu0 0.0
    %316 = vmatpush1.msra.mxu0 %v280
    %317 = vmatprep.subr.mxu0 0.0
    %318 = vmatpush1.msra.mxu0 0.0
    %319 = vmatprep.subr.mxu0 0.0
    %320 = vmatpush1.msra.mxu0 0.0
    %321 = vmatprep.subr.mxu0 0.0
    %322 = vmatpush1.msra.mxu0 0.0
    %323 = vmatprep.subr.mxu0 0.0
    %324 = vmatpush1.msra.mxu0 0.0
    %325 = vmatprep.subr.mxu0 0.0
    %326 = vmatpush1.msra.mxu0 0.0
    %327 = vmatprep.subr.mxu0 0.0
    %328 = vmatpush1.msra.mxu0 0.0
    %329 = vmatprep.subr.mxu0 0.0
    %330 = vmatpush1.msra.mxu0 0.0
    %331 = vmatprep.subr.mxu0 0.0
    %332 = vmatpush1.msra.mxu0 0.0
    %333 = vmatprep.subr.mxu0 0.0
    %334 = vmatpush1.msra.mxu0 0.0
    %335 = vmatprep.subr.mxu0 0.0
    %336 = vmatpush1.msra.mxu0 0.0
    %337 = vmatprep.subr.mxu0 0.0
    %338 = vmatpush1.msra.mxu0 0.0
    %339 = vmatprep.subr.mxu0 0.0
    %340 = vmatpush1.msra.mxu0 0.0
    %341 = vmatprep.subr.mxu0 0.0
    %342 = vmatpush1.msra.mxu0 0.0
    %343 = vmatprep.subr.mxu0 0.0
    %344 = vmatpush1.msra.mxu0 0.0
    %345 = vmatprep.subr.mxu0 0.0
    %346 = vmatpush1.msra.mxu0 0.0
    %347 = vmatprep.subr.mxu0 0.0
    %348 = vmatpush1.msra.mxu0 0.0
    %349 = vmatprep.mubr.f32.mxu0 0.0
    %350 = vmatmul.mubr.f32.gmra.mrb[0].mxu0 %v249
    %v351 = vpop.f32.mrb[0].mxu0
    %v352 = vadd.f32 %v284, %v351
    %v353 = vpop.f32.mrb[0].mxu0
    %354 = vmatprep.mubr.f32.mxu0 0.0
    %355 = vmatmul.mubr.f32.gmra.mrb[0].mxu0 %v250
    %v356 = vpop.f32.mrb[0].mxu0
    %v357 = vadd.f32 %v284, %v356
    %v358 = vpop.f32.mrb[0].mxu0
    %359 = vmatprep.mubr.f32.mxu0 0.0
    %360 = vmatmul.mubr.f32.gmra.mrb[0].mxu0 %v251
    %v361 = vpop.f32.mrb[0].mxu0
    %v362 = vadd.f32 %v284, %v361
    %v363 = vpop.f32.mrb[0].mxu0
    %364 = vmatprep.mubr.f32.mxu0 0.0
    %365 = vmatmul.mubr.f32.gmra.mrb[0].mxu0 %v252
    %v366 = vpop.f32.mrb[0].mxu0
    %v367 = vadd.f32 %v284, %v366
    %v368 = vpop.f32.mrb[0].mxu0
    %369 = vmatprep.mubr.f32.mxu0 0.0
    %370 = vmatmul.mubr.f32.gmra.mrb[0].mxu0 %v253
    %v371 = vpop.f32.mrb[0].mxu0
    %v372 = vadd.f32 %v284, %v371
    %v373 = vpop.f32.mrb[0].mxu0
    %374 = vmatprep.mubr.f32.mxu0 0.0
    %375 = vmatmul.mubr.f32.gmra.mrb[0].mxu0 %v254
    %v376 = vpop.f32.mrb[0].mxu0
    %v377 = vadd.f32 %v284, %v376
    %v378 = vpop.f32.mrb[0].mxu0
    %379 = vmatprep.mubr.f32.mxu0 0.0
    %380 = vmatmul.mubr.f32.gmra.mrb[0].mxu0 %v255
    %v381 = vpop.f32.mrb[0].mxu0
    %v382 = vadd.f32 %v284, %v381
    %v383 = vpop.f32.mrb[0].mxu0
    %384 = vmatprep.mubr.f32.mxu0 0.0
    %385 = vmatmul.mubr.f32.gmra.mrb[0].mxu0 %v256
    %v386 = vpop.f32.mrb[0].mxu0
    %v387 = vadd.f32 %v284, %v386
    %v388 = vpop.f32.mrb[0].mxu0
    %389 = vmatprep.mubr.f32.mxu0 0.0
    %390 = vmatmul.mubr.f32.gmra.mrb[0].mxu0 %v257
    %v391 = vpop.f32.mrb[0].mxu0
    %v392 = vadd.f32 %v284, %v391
    %v393 = vpop.f32.mrb[0].mxu0
    %394 = vmatprep.mubr.f32.mxu0 0.0
    %395 = vmatmul.mubr.f32.gmra.mrb[0].mxu0 %v258
    %v396 = vpop.f32.mrb[0].mxu0
    %v397 = vadd.f32 %v284, %v396
    %v398 = vpop.f32.mrb[0].mxu0
    %399 = vmatprep.mubr.f32.mxu0 0.0
    %400 = vmatmul.mubr.f32.gmra.mrb[0].mxu0 %v259
    %v401 = vpop.f32.mrb[0].mxu0
    %v402 = vadd.f32 %v284, %v401
    %v403 = vpop.f32.mrb[0].mxu0
    %404 = vmatprep.mubr.f32.mxu0 0.0
    %405 = vmatmul.mubr.f32.gmra.mrb[0].mxu0 %v260
    %v406 = vpop.f32.mrb[0].mxu0
    %v407 = vadd.f32 %v284, %v406
    %v408 = vpop.f32.mrb[0].mxu0
    %409 = vmatprep.mubr.f32.mxu0 0.0
    %410 = vmatmul.mubr.f32.gmra.mrb[0].mxu0 %v261
    %v411 = vpop.f32.mrb[0].mxu0
    %v412 = vadd.f32 %v284, %v411
    %v413 = vpop.f32.mrb[0].mxu0
    %414 = vmatprep.mubr.f32.mxu0 0.0
    %415 = vmatmul.mubr.f32.gmra.mrb[0].mxu0 %v262
    %v416 = vpop.f32.mrb[0].mxu0
    %v417 = vadd.f32 %v284, %v416
    %v418 = vpop.f32.mrb[0].mxu0
    %419 = vmatprep.mubr.f32.mxu0 0.0
    %420 = vmatmul.mubr.f32.gmra.mrb[0].mxu0 %v263
    %v421 = vpop.f32.mrb[0].mxu0
    %v422 = vadd.f32 %v284, %v421
    %v423 = vpop.f32.mrb[0].mxu0
    %424 = vmatprep.mubr.f32.mxu0 0.0
    %425 = vmatmul.mubr.f32.gmra.mrb[0].mxu0 %v264
    %v426 = vpop.f32.mrb[0].mxu0
    %v427 = vadd.f32 %v284, %v426
    %v428 = vpop.f32.mrb[0].mxu0
    %429 = vdwg.mxu0
    %v430 = vmax.f32 %v352, 0.0
    %v431 = vmax.f32 %v357, 0.0
    %v432 = vmax.f32 %v362, 0.0
    %v433 = vmax.f32 %v367, 0.0
    %v434 = vmax.f32 %v372, 0.0
    %v435 = vmax.f32 %v377, 0.0
    %v436 = vmax.f32 %v382, 0.0
    %v437 = vmax.f32 %v387, 0.0
    %v438 = vmax.f32 %v392, 0.0
    %v439 = vmax.f32 %v397, 0.0
    %v440 = vmax.f32 %v402, 0.0
    %v441 = vmax.f32 %v407, 0.0
    %v442 = vmax.f32 %v412, 0.0
    %v443 = vmax.f32 %v417, 0.0
    %v444 = vmax.f32 %v422, 0.0
    %v445 = vmax.f32 %v427, 0.0
    %v446 = vld [vmem:[#allocation2 + $0x80] sm:$0xff]
    %v447 = vld [vmem:[#allocation2 + $0x88] sm:$0xff]
    %v448 = vld [vmem:[#allocation2 + $0x90] sm:$0xff]
    %v449 = vld [vmem:[#allocation2 + $0x98] sm:$0xff]
    %v450 = vld [vmem:[#allocation2 + $0xa0] sm:$0xff]
    %v451 = vld [vmem:[#allocation2 + $0xa8] sm:$0xff]
    %v452 = vld [vmem:[#allocation2 + $0xb0] sm:$0xff]
    %v453 = vld [vmem:[#allocation2 + $0xb8] sm:$0xff]
    %v454 = vld [vmem:[#allocation2 + $0xc0] sm:$0xff]
    %v455 = vld [vmem:[#allocation2 + $0xc8] sm:$0xff]
    %v456 = vld [vmem:[#allocation2 + $0xd0] sm:$0xff]
    %v457 = vld [vmem:[#allocation2 + $0xd8] sm:$0xff]
    %v458 = vld [vmem:[#allocation2 + $0xe0] sm:$0xff]
    %v459 = vld [vmem:[#allocation2 + $0xe8] sm:$0xff]
    %v460 = vld [vmem:[#allocation2 + $0xf0] sm:$0xff]
    %v461 = vld [vmem:[#allocation2 + $0xf8] sm:$0xff]
    %v462 = vlaneseq
    %v463 = vshrl.u32 %v462, 7
    %v464 = vsub.s32 2, %v463
    %v465 = vrot.slane %v32, %v464
    %466 = vmatprep.subr.mxu0 0.0
    %467 = vmatpush1.msra.mxu0 %v446
    %468 = vmatprep.subr.mxu0 0.0
    %469 = vmatpush1.msra.mxu0 %v447
    %470 = vmatprep.subr.mxu0 0.0
    %471 = vmatpush1.msra.mxu0 %v448
    %472 = vmatprep.subr.mxu0 0.0
    %473 = vmatpush1.msra.mxu0 %v449
    %474 = vmatprep.subr.mxu0 0.0
    %475 = vmatpush1.msra.mxu0 %v450
    %476 = vmatprep.subr.mxu0 0.0
    %477 = vmatpush1.msra.mxu0 %v451
    %478 = vmatprep.subr.mxu0 0.0
    %479 = vmatpush1.msra.mxu0 %v452
    %480 = vmatprep.subr.mxu0 0.0
    %481 = vmatpush1.msra.mxu0 %v453
    %482 = vmatprep.subr.mxu0 0.0
    %483 = vmatpush1.msra.mxu0 %v454
    %484 = vmatprep.subr.mxu0 0.0
    %485 = vmatpush1.msra.mxu0 %v455
    %486 = vmatprep.subr.mxu0 0.0
    %487 = vmatpush1.msra.mxu0 %v456
    %488 = vmatprep.subr.mxu0 0.0
    %489 = vmatpush1.msra.mxu0 %v457
    %490 = vmatprep.subr.mxu0 0.0
    %491 = vmatpush1.msra.mxu0 %v458
    %492 = vmatprep.subr.mxu0 0.0
    %493 = vmatpush1.msra.mxu0 %v459
    %494 = vmatprep.subr.mxu0 0.0
    %495 = vmatpush1.msra.mxu0 %v460
    %496 = vmatprep.subr.mxu0 0.0
    %497 = vmatpush1.msra.mxu0 %v461
    %498 = vmatprep.subr.mxu0 0.0
    %499 = vmatpush1.msra.mxu0 0.0
    %500 = vmatprep.subr.mxu0 0.0
    %501 = vmatpush1.msra.mxu0 0.0
    %502 = vmatprep.subr.mxu0 0.0
    %503 = vmatpush1.msra.mxu0 0.0
    %504 = vmatprep.subr.mxu0 0.0
    %505 = vmatpush1.msra.mxu0 0.0
    %506 = vmatprep.subr.mxu0 0.0
    %507 = vmatpush1.msra.mxu0 0.0
    %508 = vmatprep.subr.mxu0 0.0
    %509 = vmatpush1.msra.mxu0 0.0
    %510 = vmatprep.subr.mxu0 0.0
    %511 = vmatpush1.msra.mxu0 0.0
    %512 = vmatprep.subr.mxu0 0.0
    %513 = vmatpush1.msra.mxu0 0.0
    %514 = vmatprep.subr.mxu0 0.0
    %515 = vmatpush1.msra.mxu0 0.0
    %516 = vmatprep.subr.mxu0 0.0
    %517 = vmatpush1.msra.mxu0 0.0
    %518 = vmatprep.subr.mxu0 0.0
    %519 = vmatpush1.msra.mxu0 0.0
    %520 = vmatprep.subr.mxu0 0.0
    %521 = vmatpush1.msra.mxu0 0.0
    %522 = vmatprep.subr.mxu0 0.0
    %523 = vmatpush1.msra.mxu0 0.0
    %524 = vmatprep.subr.mxu0 0.0
    %525 = vmatpush1.msra.mxu0 0.0
    %526 = vmatprep.subr.mxu0 0.0
    %527 = vmatpush1.msra.mxu0 0.0
    %528 = vmatprep.subr.mxu0 0.0
    %529 = vmatpush1.msra.mxu0 0.0
    %530 = vmatprep.mubr.f32.mxu0 0.0
    %531 = vmatmul.mubr.f32.gmra.mrb[0].mxu0 %v430
    %v532 = vpop.f32.mrb[0].mxu0
    %v533 = vadd.f32 %v465, %v532
    %v534 = vpop.f32.mrb[0].mxu0
    %535 = vmatprep.mubr.f32.mxu0 0.0
    %536 = vmatmul.mubr.f32.gmra.mrb[0].mxu0 %v431
    %v537 = vpop.f32.mrb[0].mxu0
    %v538 = vadd.f32 %v465, %v537
    %v539 = vpop.f32.mrb[0].mxu0
    %540 = vmatprep.mubr.f32.mxu0 0.0
    %541 = vmatmul.mubr.f32.gmra.mrb[0].mxu0 %v432
    %v542 = vpop.f32.mrb[0].mxu0
    %v543 = vadd.f32 %v465, %v542
    %v544 = vpop.f32.mrb[0].mxu0
    %545 = vmatprep.mubr.f32.mxu0 0.0
    %546 = vmatmul.mubr.f32.gmra.mrb[0].mxu0 %v433
    %v547 = vpop.f32.mrb[0].mxu0
    %v548 = vadd.f32 %v465, %v547
    %v549 = vpop.f32.mrb[0].mxu0
    %550 = vmatprep.mubr.f32.mxu0 0.0
    %551 = vmatmul.mubr.f32.gmra.mrb[0].mxu0 %v434
    %v552 = vpop.f32.mrb[0].mxu0
    %v553 = vadd.f32 %v465, %v552
    %v554 = vpop.f32.mrb[0].mxu0
    %555 = vmatprep.mubr.f32.mxu0 0.0
    %556 = vmatmul.mubr.f32.gmra.mrb[0].mxu0 %v435
    %v557 = vpop.f32.mrb[0].mxu0
    %v558 = vadd.f32 %v465, %v557
    %v559 = vpop.f32.mrb[0].mxu0
    %560 = vmatprep.mubr.f32.mxu0 0.0
    %561 = vmatmul.mubr.f32.gmra.mrb[0].mxu0 %v436
    %v562 = vpop.f32.mrb[0].mxu0
    %v563 = vadd.f32 %v465, %v562
    %v564 = vpop.f32.mrb[0].mxu0
    %565 = vmatprep.mubr.f32.mxu0 0.0
    %566 = vmatmul.mubr.f32.gmra.mrb[0].mxu0 %v437
    %v567 = vpop.f32.mrb[0].mxu0
    %v568 = vadd.f32 %v465, %v567
    %v569 = vpop.f32.mrb[0].mxu0
    %570 = vmatprep.mubr.f32.mxu0 0.0
    %571 = vmatmul.mubr.f32.gmra.mrb[0].mxu0 %v438
    %v572 = vpop.f32.mrb[0].mxu0
    %v573 = vadd.f32 %v465, %v572
    %v574 = vpop.f32.mrb[0].mxu0
    %575 = vmatprep.mubr.f32.mxu0 0.0
    %576 = vmatmul.mubr.f32.gmra.mrb[0].mxu0 %v439
    %v577 = vpop.f32.mrb[0].mxu0
    %v578 = vadd.f32 %v465, %v577
    %v579 = vpop.f32.mrb[0].mxu0
    %580 = vmatprep.mubr.f32.mxu0 0.0
    %581 = vmatmul.mubr.f32.gmra.mrb[0].mxu0 %v440
    %v582 = vpop.f32.mrb[0].mxu0
    %v583 = vadd.f32 %v465, %v582
    %v584 = vpop.f32.mrb[0].mxu0
    %585 = vmatprep.mubr.f32.mxu0 0.0
    %586 = vmatmul.mubr.f32.gmra.mrb[0].mxu0 %v441
    %v587 = vpop.f32.mrb[0].mxu0
    %v588 = vadd.f32 %v465, %v587
    %v589 = vpop.f32.mrb[0].mxu0
    %590 = vmatprep.mubr.f32.mxu0 0.0
    %591 = vmatmul.mubr.f32.gmra.mrb[0].mxu0 %v442
    %v592 = vpop.f32.mrb[0].mxu0
    %v593 = vadd.f32 %v465, %v592
    %v594 = vpop.f32.mrb[0].mxu0
    %595 = vmatprep.mubr.f32.mxu0 0.0
    %596 = vmatmul.mubr.f32.gmra.mrb[0].mxu0 %v443
    %v597 = vpop.f32.mrb[0].mxu0
    %v598 = vadd.f32 %v465, %v597
    %v599 = vpop.f32.mrb[0].mxu0
    %600 = vmatprep.mubr.f32.mxu0 0.0
    %601 = vmatmul.mubr.f32.gmra.mrb[0].mxu0 %v444
    %v602 = vpop.f32.mrb[0].mxu0
    %v603 = vadd.f32 %v465, %v602
    %v604 = vpop.f32.mrb[0].mxu0
    %605 = vmatprep.mubr.f32.mxu0 0.0
    %606 = vmatmul.mubr.f32.gmra.mrb[0].mxu0 %v445
    %v607 = vpop.f32.mrb[0].mxu0
    %v608 = vadd.f32 %v465, %v607
    %v609 = vpop.f32.mrb[0].mxu0
    %610 = vdwg.mxu0
    %v611 = vlaneseq
    %v612 = vand.u32 %v611, 127
    %vm613 = vcmp.eq.s32.totalorder %v612, 32
    %v614 = vmax.f32 %v533, 0.0
    %v615 = vmax.f32 %v538, 0.0
    %v616 = vmax.f32 %v543, 0.0
    %v617 = vmax.f32 %v548, 0.0
    %v618 = vmax.f32 %v553, 0.0
    %v619 = vmax.f32 %v558, 0.0
    %v620 = vmax.f32 %v563, 0.0
    %v621 = vmax.f32 %v568, 0.0
    %v622 = vmax.f32 %v573, 0.0
    %v623 = vmax.f32 %v578, 0.0
    %v624 = vmax.f32 %v583, 0.0
    %v625 = vmax.f32 %v588, 0.0
    %v626 = vmax.f32 %v593, 0.0
    %v627 = vmax.f32 %v598, 0.0
    %v628 = vmax.f32 %v603, 0.0
    %v629 = vmax.f32 %v608, 0.0
    %v630 = vsel %vm613, %v533, %v614
    %v631 = vsel %vm613, %v538, %v615
    %v632 = vsel %vm613, %v543, %v616
    %v633 = vsel %vm613, %v548, %v617
    %v634 = vsel %vm613, %v553, %v618
    %v635 = vsel %vm613, %v558, %v619
    %v636 = vsel %vm613, %v563, %v620
    %v637 = vsel %vm613, %v568, %v621
    %v638 = vsel %vm613, %v573, %v622
    %v639 = vsel %vm613, %v578, %v623
    %v640 = vsel %vm613, %v583, %v624
    %v641 = vsel %vm613, %v588, %v625
    %v642 = vsel %vm613, %v593, %v626
    %v643 = vsel %vm613, %v598, %v627
    %v644 = vsel %vm613, %v603, %v628
    %v645 = vsel %vm613, %v608, %v629
    %v646 = vld [vmem:[#allocation2 + $0x100] sm:$0xff]
    %v647 = vld [vmem:[#allocation2 + $0x108] sm:$0xff]
    %v648 = vld [vmem:[#allocation2 + $0x110] sm:$0xff]
    %v649 = vld [vmem:[#allocation2 + $0x118] sm:$0xff]
    %v650 = vld [vmem:[#allocation2 + $0x120] sm:$0xff]
    %v651 = vld [vmem:[#allocation2 + $0x128] sm:$0xff]
    %v652 = vld [vmem:[#allocation2 + $0x130] sm:$0xff]
    %v653 = vld [vmem:[#allocation2 + $0x138] sm:$0xff]
    %v654 = vld [vmem:[#allocation2 + $0x140] sm:$0xff]
    %v655 = vld [vmem:[#allocation2 + $0x148] sm:$0xff]
    %v656 = vld [vmem:[#allocation2 + $0x150] sm:$0xff]
    %v657 = vld [vmem:[#allocation2 + $0x158] sm:$0xff]
    %v658 = vld [vmem:[#allocation2 + $0x160] sm:$0xff]
    %v659 = vld [vmem:[#allocation2 + $0x168] sm:$0xff]
    %v660 = vld [vmem:[#allocation2 + $0x170] sm:$0xff]
    %v661 = vld [vmem:[#allocation2 + $0x178] sm:$0xff]
    %v662 = vlaneseq
    %v663 = vshrl.u32 %v662, 7
    %v664 = vsub.s32 3, %v663
    %v665 = vrot.slane %v32, %v664
    %666 = vmatprep.subr.mxu0 0.0
    %667 = vmatpush1.msra.mxu0 %v646
    %668 = vmatprep.subr.mxu0 0.0
    %669 = vmatpush1.msra.mxu0 %v647
    %670 = vmatprep.subr.mxu0 0.0
    %671 = vmatpush1.msra.mxu0 %v648
    %672 = vmatprep.subr.mxu0 0.0
    %673 = vmatpush1.msra.mxu0 %v649
    %674 = vmatprep.subr.mxu0 0.0
    %675 = vmatpush1.msra.mxu0 %v650
    %676 = vmatprep.subr.mxu0 0.0
    %677 = vmatpush1.msra.mxu0 %v651
    %678 = vmatprep.subr.mxu0 0.0
    %679 = vmatpush1.msra.mxu0 %v652
    %680 = vmatprep.subr.mxu0 0.0
    %681 = vmatpush1.msra.mxu0 %v653
    %682 = vmatprep.subr.mxu0 0.0
    %683 = vmatpush1.msra.mxu0 %v654
    %684 = vmatprep.subr.mxu0 0.0
    %685 = vmatpush1.msra.mxu0 %v655
    %686 = vmatprep.subr.mxu0 0.0
    %687 = vmatpush1.msra.mxu0 %v656
    %688 = vmatprep.subr.mxu0 0.0
    %689 = vmatpush1.msra.mxu0 %v657
    %690 = vmatprep.subr.mxu0 0.0
    %691 = vmatpush1.msra.mxu0 %v658
    %692 = vmatprep.subr.mxu0 0.0
    %693 = vmatpush1.msra.mxu0 %v659
    %694 = vmatprep.subr.mxu0 0.0
    %695 = vmatpush1.msra.mxu0 %v660
    %696 = vmatprep.subr.mxu0 0.0
    %697 = vmatpush1.msra.mxu0 %v661
    %698 = vmatprep.subr.mxu0 0.0
    %699 = vmatpush1.msra.mxu0 0.0
    %700 = vmatprep.subr.mxu0 0.0
    %701 = vmatpush1.msra.mxu0 0.0
    %702 = vmatprep.subr.mxu0 0.0
    %703 = vmatpush1.msra.mxu0 0.0
    %704 = vmatprep.subr.mxu0 0.0
    %705 = vmatpush1.msra.mxu0 0.0
    %706 = vmatprep.subr.mxu0 0.0
    %707 = vmatpush1.msra.mxu0 0.0
    %708 = vmatprep.subr.mxu0 0.0
    %709 = vmatpush1.msra.mxu0 0.0
    %710 = vmatprep.subr.mxu0 0.0
    %711 = vmatpush1.msra.mxu0 0.0
    %712 = vmatprep.subr.mxu0 0.0
    %713 = vmatpush1.msra.mxu0 0.0
    %714 = vmatprep.subr.mxu0 0.0
    %715 = vmatpush1.msra.mxu0 0.0
    %716 = vmatprep.subr.mxu0 0.0
    %717 = vmatpush1.msra.mxu0 0.0
    %718 = vmatprep.subr.mxu0 0.0
    %719 = vmatpush1.msra.mxu0 0.0
    %720 = vmatprep.subr.mxu0 0.0
    %721 = vmatpush1.msra.mxu0 0.0
    %722 = vmatprep.subr.mxu0 0.0
    %723 = vmatpush1.msra.mxu0 0.0
    %724 = vmatprep.subr.mxu0 0.0
    %725 = vmatpush1.msra.mxu0 0.0
    %726 = vmatprep.subr.mxu0 0.0
    %727 = vmatpush1.msra.mxu0 0.0
    %728 = vmatprep.subr.mxu0 0.0
    %729 = vmatpush1.msra.mxu0 0.0
    %730 = vmatprep.mubr.f32.mxu0 0.0
    %731 = vmatmul.mubr.f32.gmra.mrb[0].mxu0 %v630
    %v732 = vpop.f32.mrb[0].mxu0
    %v733 = vadd.f32 %v665, %v732
    %v734 = vpop.f32.mrb[0].mxu0
    %735 = vmatprep.mubr.f32.mxu0 0.0
    %736 = vmatmul.mubr.f32.gmra.mrb[0].mxu0 %v631
    %v737 = vpop.f32.mrb[0].mxu0
    %v738 = vadd.f32 %v665, %v737
    %v739 = vpop.f32.mrb[0].mxu0
    %740 = vmatprep.mubr.f32.mxu0 0.0
    %741 = vmatmul.mubr.f32.gmra.mrb[0].mxu0 %v632
    %v742 = vpop.f32.mrb[0].mxu0
    %v743 = vadd.f32 %v665, %v742
    %v744 = vpop.f32.mrb[0].mxu0
    %745 = vmatprep.mubr.f32.mxu0 0.0
    %746 = vmatmul.mubr.f32.gmra.mrb[0].mxu0 %v633
    %v747 = vpop.f32.mrb[0].mxu0
    %v748 = vadd.f32 %v665, %v747
    %v749 = vpop.f32.mrb[0].mxu0
    %750 = vmatprep.mubr.f32.mxu0 0.0
    %751 = vmatmul.mubr.f32.gmra.mrb[0].mxu0 %v634
    %v752 = vpop.f32.mrb[0].mxu0
    %v753 = vadd.f32 %v665, %v752
    %v754 = vpop.f32.mrb[0].mxu0
    %755 = vmatprep.mubr.f32.mxu0 0.0
    %756 = vmatmul.mubr.f32.gmra.mrb[0].mxu0 %v635
    %v757 = vpop.f32.mrb[0].mxu0
    %v758 = vadd.f32 %v665, %v757
    %v759 = vpop.f32.mrb[0].mxu0
    %760 = vmatprep.mubr.f32.mxu0 0.0
    %761 = vmatmul.mubr.f32.gmra.mrb[0].mxu0 %v636
    %v762 = vpop.f32.mrb[0].mxu0
    %v763 = vadd.f32 %v665, %v762
    %v764 = vpop.f32.mrb[0].mxu0
    %765 = vmatprep.mubr.f32.mxu0 0.0
    %766 = vmatmul.mubr.f32.gmra.mrb[0].mxu0 %v637
    %v767 = vpop.f32.mrb[0].mxu0
    %v768 = vadd.f32 %v665, %v767
    %v769 = vpop.f32.mrb[0].mxu0
    %770 = vmatprep.mubr.f32.mxu0 0.0
    %771 = vmatmul.mubr.f32.gmra.mrb[0].mxu0 %v638
    %v772 = vpop.f32.mrb[0].mxu0
    %v773 = vadd.f32 %v665, %v772
    %v774 = vpop.f32.mrb[0].mxu0
    %775 = vmatprep.mubr.f32.mxu0 0.0
    %776 = vmatmul.mubr.f32.gmra.mrb[0].mxu0 %v639
    %v777 = vpop.f32.mrb[0].mxu0
    %v778 = vadd.f32 %v665, %v777
    %v779 = vpop.f32.mrb[0].mxu0
    %780 = vmatprep.mubr.f32.mxu0 0.0
    %781 = vmatmul.mubr.f32.gmra.mrb[0].mxu0 %v640
    %v782 = vpop.f32.mrb[0].mxu0
    %v783 = vadd.f32 %v665, %v782
    %v784 = vpop.f32.mrb[0].mxu0
    %785 = vmatprep.mubr.f32.mxu0 0.0
    %786 = vmatmul.mubr.f32.gmra.mrb[0].mxu0 %v641
    %v787 = vpop.f32.mrb[0].mxu0
    %v788 = vadd.f32 %v665, %v787
    %v789 = vpop.f32.mrb[0].mxu0
    %790 = vmatprep.mubr.f32.mxu0 0.0
    %791 = vmatmul.mubr.f32.gmra.mrb[0].mxu0 %v642
    %v792 = vpop.f32.mrb[0].mxu0
    %v793 = vadd.f32 %v665, %v792
    %v794 = vpop.f32.mrb[0].mxu0
    %795 = vmatprep.mubr.f32.mxu0 0.0
    %796 = vmatmul.mubr.f32.gmra.mrb[0].mxu0 %v643
    %v797 = vpop.f32.mrb[0].mxu0
    %v798 = vadd.f32 %v665, %v797
    %v799 = vpop.f32.mrb[0].mxu0
    %800 = vmatprep.mubr.f32.mxu0 0.0
    %801 = vmatmul.mubr.f32.gmra.mrb[0].mxu0 %v644
    %v802 = vpop.f32.mrb[0].mxu0
    %v803 = vadd.f32 %v665, %v802
    %v804 = vpop.f32.mrb[0].mxu0
    %805 = vmatprep.mubr.f32.mxu0 0.0
    %806 = vmatmul.mubr.f32.gmra.mrb[0].mxu0 %v645
    %v807 = vpop.f32.mrb[0].mxu0
    %v808 = vadd.f32 %v665, %v807
    %v809 = vpop.f32.mrb[0].mxu0
    %810 = vdwg.mxu0
    %811 = vst [vmem:[#allocation5] sm:$0xff] %v733
    %812 = vst [vmem:[#allocation5 + $0x8] sm:$0xff] %v738
    %813 = vst [vmem:[#allocation5 + $0x10] sm:$0xff] %v743
    %814 = vst [vmem:[#allocation5 + $0x18] sm:$0xff] %v748
    %815 = vst [vmem:[#allocation5 + $0x20] sm:$0xff] %v753
    %816 = vst [vmem:[#allocation5 + $0x28] sm:$0xff] %v758
    %817 = vst [vmem:[#allocation5 + $0x30] sm:$0xff] %v763
    %818 = vst [vmem:[#allocation5 + $0x38] sm:$0xff] %v768
    %819 = vst [vmem:[#allocation5 + $0x40] sm:$0xff] %v773
    %820 = vst [vmem:[#allocation5 + $0x48] sm:$0xff] %v778
    %821 = vst [vmem:[#allocation5 + $0x50] sm:$0xff] %v783
    %822 = vst [vmem:[#allocation5 + $0x58] sm:$0xff] %v788
    %823 = vst [vmem:[#allocation5 + $0x60] sm:$0xff] %v793
    %824 = vst [vmem:[#allocation5 + $0x68] sm:$0xff] %v798
    %825 = vst [vmem:[#allocation5 + $0x70] sm:$0xff] %v803
    %826 = vst [vmem:[#allocation5 + $0x78] sm:$0xff] %v808
    // Predicated region
    $region22: #{tpu_custom_call.1} parent=1 // pred_check
      _
    $region23: #{tpu_custom_call.1} parent=1 // pred_check_branch
      %828 = sbr.rel (0) target = $region25
    $region24: #{tpu_custom_call.1} parent=1 // pred_region
      %s830 = ssub.s32 2048, 2048
      %831 = vsyncadd [#allocation4], %s830
      %s832 = sshll.u32 [#allocation5], 4
      %s833 = int_to_ptr.vmem [resolvable:$true] %s832
      %838 = dma.vmem_to_hbm [thread:$0]  %s833, 2048, %s4, [#allocation4], 128, 128, 8
    $region25: #{tpu_custom_call.1} parent=1 // pred_fallthru
      _
    // Predicated region
    $region26: #{tpu_custom_call.1} parent=1 // pred_check
      _
    $region27: #{tpu_custom_call.1} parent=1 // pred_check_branch
      %840 = sbr.rel (0) target = $region29
    $region28: #{tpu_custom_call.1} parent=1 // pred_region
      %841 = dma.done [#allocation4], 2048
    $region29: #{tpu_custom_call.1} parent=1 // pred_fallthru
      _
    %842 = vsyncpa [#allocation3], 1
    %843 = vsyncpa [#allocation4], 1

</llo_original>
